<compile_context>
chip_gen: v6e
topology: v6e:2x2x1
jax: 0.10.0
libtpu: 0.0.40
codegen_flags: <defaults>
</compile_context>

<pallas_src>
import functools

import jax
import jax.numpy as jnp
from jax import lax
from jax.experimental import pallas as pl
from jax.experimental.pallas import tpu as pltpu


# ---------------------------------------------------------------------------
# Kernel body
# ---------------------------------------------------------------------------
def _patch_expand_kernel(x_ref, w_ref, p_ref, g_ref, b_ref, o_ref, *,
                         rh, wpx, dim, eps):
    """One grid step: rh whole image rows (rh*wpx tokens).

    x_ref : (1, rh*wpx, dim)   input tokens
    w_ref : (dim, 2*dim)       mean-centered expansion weight  W(I - P)
    p_ref : (2*dim, 2*dim)     block-diagonal group-average projector P
    g_ref : (1, 2*dim)         gamma tiled over the 4 (p1,p2) groups
    b_ref : (1, 2*dim)         beta  tiled over the 4 (p1,p2) groups
    o_ref : (1, 2*rh, wpx*dim) pixel-shuffled, lane-dense output rows
    """
    # d = x @ W(I-P) == (x @ W) - group_mean(x @ W): mean folded into the weight.
    d = jnp.dot(x_ref[0], w_ref[...], preferred_element_type=jnp.float32)
    # Per-group variance broadcast back over the group lanes with ONE dot.
    var = jnp.dot(d * d, p_ref[...], preferred_element_type=jnp.float32)
    yn = d * lax.rsqrt(var + eps) * g_ref[...] + b_ref[...]
    # Cast BEFORE the in-VMEM shuffle: halves relayout traffic for bf16 output.
    yn = yn.astype(o_ref.dtype)
    # Fused 2x2 pixel shuffle: (r, w, p1, dim) -> (r, p1, w, dim) -> (2*rh, w*dim).
    # TODO(synk): evaluate strided even/odd-row stores instead of this transpose
    # when dim % 128 == 0 (perf review item); keep the XLU transpose for generality.
    yr = jnp.transpose(yn.reshape(rh, wpx, 2, dim), (0, 2, 1, 3))
    o_ref[...] = yr.reshape(1, 2 * rh, wpx * dim)


# ---------------------------------------------------------------------------
# Tiling choice
# ---------------------------------------------------------------------------
def _choose_rows_per_block(H, W, B, dim, in_bytes, out_bytes, *,
                           target_tokens=1024, vmem_budget=40 << 20):
    """Image rows per grid step.

    RH == H is always layout-legal; otherwise require the (2*RH, W*dim) output
    tile and the (RH*W, dim) input tile to meet the packed sublane multiples
    (8 rows for 32-bit, 16 rows for 16-bit dtypes -> unmasked stores)."""
    out_dim = 2 * dim
    sub_in = 16 if in_bytes <= 2 else 8
    sub_out = 16 if out_bytes <= 2 else 8

    def legal(r):
        if H % r:
            return False
        if r == H:
            return True
        return (2 * r) % sub_out == 0 and (r * W) % sub_in == 0

    def footprint(r):
        tok = r * W
        in_tile = tok * dim * in_bytes
        out_tile = 2 * r * W * dim * out_bytes
        resident = (dim * out_dim * in_bytes          # weight
                    + out_dim * out_dim * 4           # projector P (f32)
                    + 2 * out_dim * 4)                # gamma/beta
        # double-buffered in/out tiles + one extra out tile for the in-VMEM shuffle
        return 2 * in_tile + 3 * out_tile + 2 * resident

    cands = [r for r in range(1, H + 1) if legal(r)]        # never empty (r == H)
    budget_ok = [r for r in cands if footprint(r) <= vmem_budget] or [min(cands)]
    fit = [r for r in budget_ok if r * W <= max(target_tokens, W)] or [min(budget_ok)]
    # Prefer >=4 grid steps per chip so both v7x TensorCores stay pipelined.
    for min_steps in (8, 4, 2):
        multi = [r for r in fit if B * (H // r) >= min_steps]
        if multi:
            return max(multi)
    return max(fit)


# ---------------------------------------------------------------------------
# Wrapper
# ---------------------------------------------------------------------------
def patch_expand(x, w, gamma, beta, *, input_resolution, dim, eps=1e-5,
                 compute_dtype=None, out_dtype=None, target_tokens=1024):
    """PatchExpand forward.

    x     : (B, H*W, dim)
    w     : (dim, 2*dim)   = PyTorch Linear weight (2*dim, dim) transposed
    gamma : (dim//2,)      LayerNorm weight
    beta  : (dim//2,)      LayerNorm bias
    Returns (B, 4*H*W, dim//2).
    """
    H, W = input_resolution
    B, L, C = x.shape
    assert L == H * W, "input feature has wrong size"
    assert C == dim and dim % 2 == 0
    c = dim // 2
    out_dim = 2 * dim
    assert gamma.shape == (c,) and beta.shape == (c,)

    out_dtype = jnp.dtype(out_dtype) if out_dtype is not None else jnp.dtype(x.dtype)
    cmp_dtype = jnp.dtype(compute_dtype) if compute_dtype is not None else jnp.dtype(x.dtype)
    in_bytes = cmp_dtype.itemsize
    out_bytes = out_dtype.itemsize

    # LayerNorm group structure: channel i belongs to (p1,p2) group i // c.
    gid = jnp.arange(out_dim) // c
    p_avg = (gid[:, None] == gid[None, :]).astype(jnp.float32) / float(c)
    # Fold the group-mean subtraction into the weight (in f32, then cast).
    w32 = w.astype(jnp.float32)
    w_centered = w32 - jnp.dot(w32, p_avg)
    wm = w_centered.astype(cmp_dtype)
    xm = x.astype(cmp_dtype)
    g_t = jnp.tile(gamma.astype(jnp.float32), 4).reshape(1, out_dim)
    b_t = jnp.tile(beta.astype(jnp.float32), 4).reshape(1, out_dim)

    rh = _choose_rows_per_block(H, W, B, dim, in_bytes, out_bytes,
                                target_tokens=target_tokens)
    hb = H // rh
    tok = rh * W

    # Explicit VMEM limit: tile footprint + headroom, capped for 64 MiB v7x parts.
    foot = (2 * tok * dim * in_bytes
            + 3 * 2 * rh * W * dim * out_bytes
            + 2 * (dim * out_dim * in_bytes + out_dim * out_dim * 4
                   + 2 * out_dim * 4))
    vmem_limit = int(min(max(foot + (8 << 20), 16 << 20), 48 << 20))

    flops = (2 * B * L * dim * out_dim          # main matmul
             + 2 * B * L * out_dim * out_dim    # variance projector
             + 6 * B * L * out_dim)             # epilogue VPU work
    bytes_accessed = (xm.size * in_bytes + wm.size * in_bytes
                      + p_avg.size * 4 + 2 * out_dim * 4
                      + B * L * out_dim * out_bytes)
    cost = pl.CostEstimate(flops=flops, transcendentals=B * L * out_dim,
                           bytes_accessed=bytes_accessed)

    grid_spec = pl.GridSpec(
        grid=(B, hb),
        in_specs=[
            pl.BlockSpec((1, tok, dim), lambda b, h: (b, h, 0)),       # tokens
            pl.BlockSpec((dim, out_dim), lambda b, h: (0, 0)),         # W(I - P)
            pl.BlockSpec((out_dim, out_dim), lambda b, h: (0, 0)),     # P projector
            pl.BlockSpec((1, out_dim), lambda b, h: (0, 0)),           # gamma (tiled)
            pl.BlockSpec((1, out_dim), lambda b, h: (0, 0)),           # beta  (tiled)
        ],
        out_specs=pl.BlockSpec((1, 2 * rh, W * dim), lambda b, h: (b, h, 0)),
    )
    kernel = functools.partial(_patch_expand_kernel, rh=rh, wpx=W, dim=dim,
                               eps=eps)
    y = pl.pallas_call(
        kernel,
        out_shape=jax.ShapeDtypeStruct((B, 2 * H, W * dim), out_dtype),
        grid_spec=grid_spec,
        compiler_params=pltpu.CompilerParams(
            dimension_semantics=("parallel", "parallel"),
            vmem_limit_bytes=vmem_limit),
        cost_estimate=cost,
    )(xm, wm, p_avg, g_t, b_t)

    # (B, 2H, W*dim) -> (B, 4*H*W, dim//2): contiguous view, no HBM shuffle pass.
    return y.reshape(B, 4 * H * W, c)


# ---------------------------------------------------------------------------
# Pure-JAX reference (mirrors the PyTorch forward)
# ---------------------------------------------------------------------------
def _reference(x, w, gamma, beta, *, input_resolution, dim, eps=1e-5):
    H, W = input_resolution
    B, L, _ = x.shape
    c = dim // 2
    y = x @ w                                    # (B, L, 2*dim)
    y = y.reshape(B, H, W, 2, 2, c)              # (b, h, w, p1, p2, c)
    y = jnp.transpose(y, (0, 1, 3, 2, 4, 5))     # (b, h, p1, w, p2, c)
    y = y.reshape(B, 4 * H * W, c)
    mean = jnp.mean(y, axis=-1, keepdims=True)
    var = jnp.mean((y - mean) ** 2, axis=-1, keepdims=True)
    return (y - mean) / jnp.sqrt(var + eps) * gamma + beta


if __name__ == "__main__":
    # Small shapes consistent with the module: B=2, H=W=8, dim=32 (c=16).
    B, H, W, dim = 2, 8, 8, 32
    c = dim // 2
    key = jax.random.PRNGKey(0)
    kx, kw, kg, kb = jax.random.split(key, 4)

    x = jax.random.normal(kx, (B, H * W, dim), dtype=jnp.float32)
    # nn.Linear(dim, 2*dim, bias=False): weight (2*dim, dim); we pass W^T.
    w = jax.random.normal(kw, (dim, 2 * dim), dtype=jnp.float32) * 0.05
    gamma = 1.0 + 0.1 * jax.random.normal(kg, (c,), dtype=jnp.float32)
    beta = 0.1 * jax.random.normal(kb, (c,), dtype=jnp.float32)

    ref = _reference(x, w, gamma, beta, input_resolution=(H, W), dim=dim)

    # f32 path: tight check against the reference.
    out = patch_expand(x, w, gamma, beta, input_resolution=(H, W), dim=dim)
    out = jax.block_until_ready(out)
    assert out.shape == (B, 4 * H * W, c)
    assert jnp.allclose(out, ref, atol=1e-4, rtol=1e-4)

    # bf16 operands + bf16 output (halves HBM traffic on v6e/v7x): loose check.
    out_bf16 = patch_expand(x, w, gamma, beta, input_resolution=(H, W), dim=dim,
                            compute_dtype=jnp.bfloat16, out_dtype=jnp.bfloat16)
    out_bf16 = jax.block_until_ready(out_bf16)
    assert out_bf16.shape == (B, 4 * H * W, c)
    assert out_bf16.dtype == jnp.bfloat16
    assert float(jnp.max(jnp.abs(out_bf16.astype(jnp.float32) - ref))) < 0.25

    print("KERNEL_OK")
</pallas_src>

<mosaic_0001>
module attributes {stable_mosaic.version = 11 : i64} {
  func.func @_patch_expand_kernel(%arg0: i32, %arg1: i32, %arg2: memref<1x32x32xf32, #tpu.memory_space<vmem>>, %arg3: memref<32x64xf32, #tpu.memory_space<vmem>>, %arg4: memref<64x64xf32, #tpu.memory_space<vmem>>, %arg5: memref<1x64xf32, #tpu.memory_space<vmem>>, %arg6: memref<1x64xf32, #tpu.memory_space<vmem>>, %arg7: memref<1x8x256xf32, #tpu.memory_space<vmem>>) attributes {dimension_semantics = [#tpu.dimension_semantics<parallel>, #tpu.dimension_semantics<parallel>], iteration_bounds = array<i64: 2, 2>, scalar_prefetch = 0 : i64, scratch_operands = 0 : i64, tpu.core_type = #tpu.core_type<tc>, window_params = [{transform_indices = @transform_0, window_bounds = array<i64: 1, 32, 32>}, {pipeline_mode = #tpu.pipeline_mode<synchronous>, transform_indices = @transform_1, window_bounds = array<i64: 32, 64>}, {pipeline_mode = #tpu.pipeline_mode<synchronous>, transform_indices = @transform_2, window_bounds = array<i64: 64, 64>}, {pipeline_mode = #tpu.pipeline_mode<synchronous>, transform_indices = @transform_3, window_bounds = array<i64: 1, 64>}, {pipeline_mode = #tpu.pipeline_mode<synchronous>, transform_indices = @transform_4, window_bounds = array<i64: 1, 64>}, {transform_indices = @transform_5, window_bounds = array<i64: 1, 8, 256>}]} {
    %c0 = arith.constant 0 : index
    %c0_0 = arith.constant 0 : index
    %c0_1 = arith.constant 0 : index
    %0 = vector.load %arg2[%c0, %c0_0, %c0_1] : memref<1x32x32xf32, #tpu.memory_space<vmem>>, vector<1x32x32xf32>
    %1 = vector.shape_cast %0 : vector<1x32x32xf32> to vector<32x32xf32>
    %c0_2 = arith.constant 0 : index
    %c0_3 = arith.constant 0 : index
    %2 = vector.load %arg3[%c0_2, %c0_3] : memref<32x64xf32, #tpu.memory_space<vmem>>, vector<32x64xf32>
    %cst = arith.constant dense<0.000000e+00> : vector<32x64xf32>
    %3 = tpu.matmul %1, %2, %cst {dimension_numbers = #tpu.dot_dimension_numbers<[1], [0], [0], [1], [0, 0, 1, 1], [], []>} : vector<32x32xf32>, vector<32x64xf32>, vector<32x64xf32> -> vector<32x64xf32>
    %4 = arith.mulf %3, %3 : vector<32x64xf32>
    %c0_4 = arith.constant 0 : index
    %c0_5 = arith.constant 0 : index
    %5 = vector.load %arg4[%c0_4, %c0_5] : memref<64x64xf32, #tpu.memory_space<vmem>>, vector<64x64xf32>
    %cst_6 = arith.constant dense<0.000000e+00> : vector<32x64xf32>
    %6 = tpu.matmul %4, %5, %cst_6 {dimension_numbers = #tpu.dot_dimension_numbers<[1], [0], [0], [1], [0, 0, 1, 1], [], []>} : vector<32x64xf32>, vector<64x64xf32>, vector<32x64xf32> -> vector<32x64xf32>
    %cst_7 = arith.constant 9.99999974E-6 : f32
    %7 = vector.broadcast %cst_7 : f32 to vector<32x64xf32>
    %8 = arith.addf %6, %7 : vector<32x64xf32>
    %9 = math.rsqrt %8 : vector<32x64xf32>
    %10 = arith.mulf %3, %9 : vector<32x64xf32>
    %c0_8 = arith.constant 0 : index
    %c0_9 = arith.constant 0 : index
    %11 = vector.load %arg5[%c0_8, %c0_9] : memref<1x64xf32, #tpu.memory_space<vmem>>, vector<1x64xf32>
    %12 = vector.broadcast %11 : vector<1x64xf32> to vector<32x64xf32>
    %13 = arith.mulf %10, %12 : vector<32x64xf32>
    %c0_10 = arith.constant 0 : index
    %c0_11 = arith.constant 0 : index
    %14 = vector.load %arg6[%c0_10, %c0_11] : memref<1x64xf32, #tpu.memory_space<vmem>>, vector<1x64xf32>
    %15 = vector.broadcast %14 : vector<1x64xf32> to vector<32x64xf32>
    %16 = arith.addf %13, %15 : vector<32x64xf32>
    %17 = vector.shape_cast %16 : vector<32x64xf32> to vector<4x8x2x32xf32>
    %18 = tpu.transpose %17, [0, 2, 1, 3] : vector<4x8x2x32xf32> -> vector<4x2x8x32xf32>
    %19 = vector.shape_cast %18 : vector<4x2x8x32xf32> to vector<1x8x256xf32>
    %c0_12 = arith.constant 0 : index
    %c0_13 = arith.constant 0 : index
    %c0_14 = arith.constant 0 : index
    %20 = vector.load %arg7[%c0_12, %c0_13, %c0_14] : memref<1x8x256xf32, #tpu.memory_space<vmem>>, vector<1x8x256xf32>
    tpu.vector_store %arg7[%c0_12, %c0_13, %c0_14], %19 {strides = array<i32>} : memref<1x8x256xf32, #tpu.memory_space<vmem>>, vector<1x8x256xf32>,
    return
  }
  func.func @transform_0(%arg0: i32, %arg1: i32) -> (i32, i32, i32) {
    %c0_i32 = arith.constant 0 : i32
    %c0_i32_0 = arith.constant 0 : i32
    return %arg0, %arg1, %c0_i32 : i32, i32, i32
  }
  func.func @transform_1(%arg0: i32, %arg1: i32) -> (i32, i32) {
    %c0_i32 = arith.constant 0 : i32
    %c0_i32_0 = arith.constant 0 : i32
    %c0_i32_1 = arith.constant 0 : i32
    return %c0_i32, %c0_i32_0 : i32, i32
  }
  func.func @transform_2(%arg0: i32, %arg1: i32) -> (i32, i32) {
    %c0_i32 = arith.constant 0 : i32
    %c0_i32_0 = arith.constant 0 : i32
    %c0_i32_1 = arith.constant 0 : i32
    return %c0_i32, %c0_i32_0 : i32, i32
  }
  func.func @transform_3(%arg0: i32, %arg1: i32) -> (i32, i32) {
    %c0_i32 = arith.constant 0 : i32
    %c0_i32_0 = arith.constant 0 : i32
    %c0_i32_1 = arith.constant 0 : i32
    return %c0_i32, %c0_i32_0 : i32, i32
  }
  func.func @transform_4(%arg0: i32, %arg1: i32) -> (i32, i32) {
    %c0_i32 = arith.constant 0 : i32
    %c0_i32_0 = arith.constant 0 : i32
    %c0_i32_1 = arith.constant 0 : i32
    return %c0_i32, %c0_i32_0 : i32, i32
  }
  func.func @transform_5(%arg0: i32, %arg1: i32) -> (i32, i32, i32) {
    %c0_i32 = arith.constant 0 : i32
    %c0_i32_0 = arith.constant 0 : i32
    return %arg0, %arg1, %c0_i32 : i32, i32, i32
  }
}

</mosaic_0001>

<llo_original>
// kernel: tpu_custom_call.1
$region0: #{tpu_custom_call.1}
  #allocation0 [shape = 'u32[]', space=smem, size = 0x4, offset = 0x4, fixed_abs, tag = 'smem constant byte address 0x4 - core index']
  #allocation1 [shape = 'u32[144,128]{1,0:T(1,128)}', space=vmem, size = 0x12000, scoped, tag = 'internal scratch']
  %s0 = inlined_call_operand.vmem [shape: f32[2,64,32], index: 0, kind: input, shape index: {}]
  %s1 = inlined_call_operand.vmem [shape: f32[32,64], index: 1, kind: input, shape index: {}]
  %s2 = inlined_call_operand.vmem [shape: f32[64,64], index: 2, kind: input, shape index: {}]
  %s3 = inlined_call_operand.vmem [shape: f32[1,64], index: 3, kind: input, shape index: {}]
  %s4 = inlined_call_operand.vmem [shape: f32[1,64], index: 4, kind: input, shape index: {}]
  %s5 = inlined_call_operand.hbm [shape: f32[2,16,256], index: 5, kind: output, shape index: {}]
  %s6 = sld [smem:[#allocation0]]
  $region53: #{tpu_custom_call.1} parent=0
    _
  %s8 = ssub.s32 1, %s6
  %s9 = scalar_select 0, %s8, %s6
  $region1: #{tpu_custom_call.1} parent=0
    #allocation2 [shape = 'u8[16384]{0}', space=vmem, size = 0x4000, scoped, tag = 'output window, operand 0']
    #allocation3 [shape = 's32[2]{0}', space=sflag, size = 0x8, scoped, tag = 'scoped memory for tpu_custom_call.1']
    %10 = vsyncpa [#allocation3], 0
    %s11 = scalar_lea.sflag [#allocation3], 1
    %12 = vsyncpa %s11, 0
    loop: start=0, step=1, limit=6
    $region2: #{tpu_custom_call.1} parent=1 // loop_pre_header
      _
    $region3: #{tpu_custom_call.1} parent=1 // loop_header
      %s14 = sphi 0, %s18
      %p15 = scmp.ge.s32.totalorder %s14, 6
      %s21 = sphi 0, %s33
      %s22 = sphi 0, %s29
      %s23 = sphi 0, %s21
      %s24 = sphi 0, %s22
      %s25 = sphi 0, %s23
      %s26 = sphi 0, %s24
      %s38 = sphi 0, %s40
      %s41 = sphi 0, %s38
      %s42 = sphi 0, %s41
      %s58 = sphi 0, %s42
      %s62 = sphi 0, %s62
      %s64 = sphi 0, %s62
      %s65 = sphi 0, %s64
      %s79 = sphi 0, %s65
      %s83 = sphi 0, %s83
      %s85 = sphi 0, %s83
      %s86 = sphi 0, %s85
      %s100 = sphi 0, %s86
      %s104 = sphi 0, %s104
      %s106 = sphi 0, %s104
      %s107 = sphi 0, %s106
      %s121 = sphi 0, %s107
      %s125 = sphi 0, %s125
      %s127 = sphi 0, %s125
      %s128 = sphi 0, %s127
      %s142 = sphi 0, %s128
      %s150 = sphi 0, %s152
      %s153 = sphi 0, %s150
      %s154 = sphi 0, %s153
      %s170 = sphi 0, %s154
    $region4: #{tpu_custom_call.1} parent=1 // loop_header_branch
      %17 = sbr.rel (%p15) target = $region8
    $region5: #{tpu_custom_call.1} parent=1 // loop_body
      %s19 = ssub.s32 %s14, 1
      %s20 = ssub.s32 %s14, 2
      %s27 = sadd.s32 1, %s22
      %p28 = scmp.ge.s32.totalorder %s27, 2
      %s29 = scalar_select %p28, 0, %s27
      %s30 = sadd.s32 1, %s21
      %s31 = scalar_select %p28, %s30, %s21
      %p32 = scmp.ge.s32.totalorder %s31, 2
      %s33 = scalar_select %p32, 0, %s31
      %s34 = ssub.s32 %s21, %s33
      %s35 = ssub.s32 %s22, %s29
      %s36 = sor.u32 %s34, %s35
      %p37 = scmp.eq.s32.totalorder %s36, 0
      %s39 = sadd.s32 %s38, 1
      %s40 = scalar_select %p37, %s38, %s39
      %p43 = pneg %p37
      %p44 = scmp.eq.s32.totalorder %s14, 3
      %p45 = por %p43, %p44
      %p46 = scmp.ne.s32.totalorder %s38, %s41
      %p47 = scmp.eq.s32.totalorder %s14, 0
      %p48 = por %p46, %p47
      %p49 = scmp.ne.s32.totalorder %s38, %s41
      %p50 = scmp.eq.s32.totalorder %s19, 3
      %p51 = por %p49, %p50
      %p52 = scmp.ne.s32.totalorder %s41, %s42
      %p53 = scmp.eq.s32.totalorder %s19, 0
      %p54 = por %p52, %p53
      %p55 = scmp.ne.s32.totalorder %s41, %s42
      %p56 = scmp.eq.s32.totalorder %s20, 3
      %p57 = por %p55, %p56
      %p59 = scmp.ne.s32.totalorder %s42, %s58
      %p60 = scmp.eq.s32.totalorder %s20, 0
      %p61 = por %p59, %p60
      %s63 = sadd.s32 %s62, 1
      %p66 = scmp.eq.s32.totalorder %s14, 3
      %p67 = scmp.ne.s32.totalorder %s62, %s64
      %p68 = scmp.eq.s32.totalorder %s14, 0
      %p69 = por %p67, %p68
      %p70 = scmp.ne.s32.totalorder %s62, %s64
      %p71 = scmp.eq.s32.totalorder %s19, 3
      %p72 = por %p70, %p71
      %p73 = scmp.ne.s32.totalorder %s64, %s65
      %p74 = scmp.eq.s32.totalorder %s19, 0
      %p75 = por %p73, %p74
      %p76 = scmp.ne.s32.totalorder %s64, %s65
      %p77 = scmp.eq.s32.totalorder %s20, 3
      %p78 = por %p76, %p77
      %p80 = scmp.ne.s32.totalorder %s65, %s79
      %p81 = scmp.eq.s32.totalorder %s20, 0
      %p82 = por %p80, %p81
      %s84 = sadd.s32 %s83, 1
      %p87 = scmp.eq.s32.totalorder %s14, 3
      %p88 = scmp.ne.s32.totalorder %s83, %s85
      %p89 = scmp.eq.s32.totalorder %s14, 0
      %p90 = por %p88, %p89
      %p91 = scmp.ne.s32.totalorder %s83, %s85
      %p92 = scmp.eq.s32.totalorder %s19, 3
      %p93 = por %p91, %p92
      %p94 = scmp.ne.s32.totalorder %s85, %s86
      %p95 = scmp.eq.s32.totalorder %s19, 0
      %p96 = por %p94, %p95
      %p97 = scmp.ne.s32.totalorder %s85, %s86
      %p98 = scmp.eq.s32.totalorder %s20, 3
      %p99 = por %p97, %p98
      %p101 = scmp.ne.s32.totalorder %s86, %s100
      %p102 = scmp.eq.s32.totalorder %s20, 0
      %p103 = por %p101, %p102
      %s105 = sadd.s32 %s104, 1
      %p108 = scmp.eq.s32.totalorder %s14, 3
      %p109 = scmp.ne.s32.totalorder %s104, %s106
      %p110 = scmp.eq.s32.totalorder %s14, 0
      %p111 = por %p109, %p110
      %p112 = scmp.ne.s32.totalorder %s104, %s106
      %p113 = scmp.eq.s32.totalorder %s19, 3
      %p114 = por %p112, %p113
      %p115 = scmp.ne.s32.totalorder %s106, %s107
      %p116 = scmp.eq.s32.totalorder %s19, 0
      %p117 = por %p115, %p116
      %p118 = scmp.ne.s32.totalorder %s106, %s107
      %p119 = scmp.eq.s32.totalorder %s20, 3
      %p120 = por %p118, %p119
      %p122 = scmp.ne.s32.totalorder %s107, %s121
      %p123 = scmp.eq.s32.totalorder %s20, 0
      %p124 = por %p122, %p123
      %s126 = sadd.s32 %s125, 1
      %p129 = scmp.eq.s32.totalorder %s14, 3
      %p130 = scmp.ne.s32.totalorder %s125, %s127
      %p131 = scmp.eq.s32.totalorder %s14, 0
      %p132 = por %p130, %p131
      %p133 = scmp.ne.s32.totalorder %s125, %s127
      %p134 = scmp.eq.s32.totalorder %s19, 3
      %p135 = por %p133, %p134
      %p136 = scmp.ne.s32.totalorder %s127, %s128
      %p137 = scmp.eq.s32.totalorder %s19, 0
      %p138 = por %p136, %p137
      %p139 = scmp.ne.s32.totalorder %s127, %s128
      %p140 = scmp.eq.s32.totalorder %s20, 3
      %p141 = por %p139, %p140
      %p143 = scmp.ne.s32.totalorder %s128, %s142
      %p144 = scmp.eq.s32.totalorder %s20, 0
      %p145 = por %p143, %p144
      %s146 = ssub.s32 %s21, %s33
      %s147 = ssub.s32 %s22, %s29
      %s148 = sor.u32 %s146, %s147
      %p149 = scmp.eq.s32.totalorder %s148, 0
      %s151 = sadd.s32 %s150, 1
      %s152 = scalar_select %p149, %s150, %s151
      %p155 = pneg %p149
      %p156 = scmp.eq.s32.totalorder %s14, 3
      %p157 = por %p155, %p156
      %p158 = scmp.ne.s32.totalorder %s150, %s153
      %p159 = scmp.eq.s32.totalorder %s14, 0
      %p160 = por %p158, %p159
      %p161 = scmp.ne.s32.totalorder %s150, %s153
      %p162 = scmp.eq.s32.totalorder %s19, 3
      %p163 = por %p161, %p162
      %p164 = scmp.ne.s32.totalorder %s153, %s154
      %p165 = scmp.eq.s32.totalorder %s19, 0
      %p166 = por %p164, %p165
      %p167 = scmp.ne.s32.totalorder %s153, %s154
      %p168 = scmp.eq.s32.totalorder %s20, 3
      %p169 = por %p167, %p168
      %p171 = scmp.ne.s32.totalorder %s154, %s170
      %p172 = scmp.eq.s32.totalorder %s20, 0
      %p173 = por %p171, %p172
      %p174 = scmp.le.s32.totalorder 1, %s14
      %p175 = scmp.lt.s32.totalorder %s14, 5
      %p176 = pnand %p174, %p175
      %p177 = pneg %p176
      // Predicated region
      $region9: #{tpu_custom_call.1} parent=5 // pred_check
        _
      $region10: #{tpu_custom_call.1} parent=5 // pred_check_branch
        %179 = sbr.rel (%p176) target = $region12
      $region11: #{tpu_custom_call.1} parent=5 // pred_region
        %s180 = ssub.s32 %s14, 1
        // Predicated region
        $region13: #{tpu_custom_call.1} parent=11 // pred_check
          %p181 = pneg %p75
        $region14: #{tpu_custom_call.1} parent=11 // pred_check_branch
          %183 = sbr.rel (%p181) target = $region16
        $region15: #{tpu_custom_call.1} parent=11 // pred_region
          _
        $region16: #{tpu_custom_call.1} parent=11 // pred_fallthru
          _
        // Predicated region
        $region17: #{tpu_custom_call.1} parent=11 // pred_check
          %p184 = pneg %p96
        $region18: #{tpu_custom_call.1} parent=11 // pred_check_branch
          %186 = sbr.rel (%p184) target = $region20
        $region19: #{tpu_custom_call.1} parent=11 // pred_region
          _
        $region20: #{tpu_custom_call.1} parent=11 // pred_fallthru
          _
        // Predicated region
        $region21: #{tpu_custom_call.1} parent=11 // pred_check
          %p187 = pneg %p117
        $region22: #{tpu_custom_call.1} parent=11 // pred_check_branch
          %189 = sbr.rel (%p187) target = $region24
        $region23: #{tpu_custom_call.1} parent=11 // pred_region
          _
        $region24: #{tpu_custom_call.1} parent=11 // pred_fallthru
          _
        // Predicated region
        $region25: #{tpu_custom_call.1} parent=11 // pred_check
          %p190 = pneg %p138
        $region26: #{tpu_custom_call.1} parent=11 // pred_check_branch
          %192 = sbr.rel (%p190) target = $region28
        $region27: #{tpu_custom_call.1} parent=11 // pred_region
          _
        $region28: #{tpu_custom_call.1} parent=11 // pred_fallthru
          _
      $region12: #{tpu_custom_call.1} parent=5 // pred_fallthru
        _
      %p193 = scmp.lt.s32.totalorder %s14, 4
      // Predicated region
      $region29: #{tpu_custom_call.1} parent=5 // pred_check
        %p194 = pneg %p193
      $region30: #{tpu_custom_call.1} parent=5 // pred_check_branch
        %196 = sbr.rel (%p194) target = $region32
      $region31: #{tpu_custom_call.1} parent=5 // pred_region
        // Predicated region
        $region33: #{tpu_custom_call.1} parent=31 // pred_check
          %p197 = pneg %p48
        $region34: #{tpu_custom_call.1} parent=31 // pred_check_branch
          %199 = sbr.rel (%p197) target = $region36
        $region35: #{tpu_custom_call.1} parent=31 // pred_region
          %s200 = smul.u32 4, %s22
          %p201 = scmp.lt.s32.totalorder %s21, 1
          %s202 = scalar_select %p201, %s21, 1
          %p203 = scmp.lt.s32.totalorder %s200, 7
          %s204 = scalar_select %p203, %s200, 7
          %s205 = smul.addr %s202, 8
          %s206 = sadd.s32 %s204, %s205
          %s207 = smul.addr %s206, 8
          %s208 = scalar_lea.vmem %s0, %s207
          %s209 = smul.u32 4, %s22
        $region36: #{tpu_custom_call.1} parent=31 // pred_fallthru
          _
      $region32: #{tpu_custom_call.1} parent=5 // pred_fallthru
        _
      %p210 = scmp.le.s32.totalorder 1, %s14
      %p211 = scmp.lt.s32.totalorder %s14, 5
      %p212 = pnand %p210, %p211
      %p213 = pneg %p212
      // Predicated region
      $region37: #{tpu_custom_call.1} parent=5 // pred_check
        _
      $region38: #{tpu_custom_call.1} parent=5 // pred_check_branch
        %215 = sbr.rel (%p212) target = $region40
      $region39: #{tpu_custom_call.1} parent=5 // pred_region
        %s216 = ssub.s32 %s14, 1
        %s217 = smul.u32 4, %s24
        %p218 = scmp.lt.s32.totalorder %s23, 1
        %s219 = scalar_select %p218, %s23, 1
        %p220 = scmp.lt.s32.totalorder %s217, 7
        %s221 = scalar_select %p220, %s217, 7
        %s222 = smul.addr %s219, 8
        %s223 = sadd.s32 %s221, %s222
        %s224 = smul.addr %s223, 8
        %s225 = scalar_lea.vmem %s0, %s224
        %p226 = pneg %p54
        %p227 = pneg %p51
        %p228 = pneg %p75
        %p229 = pneg %p72
        %p230 = pneg %p96
        %p231 = pneg %p93
        %p232 = pneg %p117
        %p233 = pneg %p114
        %p234 = pneg %p138
        %p235 = pneg %p135
        %p236 = pneg %p166
        %p237 = pneg %p163
        %s238 = sand.u32 %s153, 1
        %s239 = scalar_lea.sflag [#allocation3], %s238
        %s240 = sand.u32 %s153, 1
        %s241 = smul.addr %s240, 16
        %s242 = scalar_lea.vmem [#allocation2], %s241
        %s243 = smul.u32 4, %s24
        %p244 = scmp.lt.s32.totalorder %s23, 1
        %s245 = scalar_select %p244, %s23, 1
        %p246 = scmp.lt.s32.totalorder %s243, 7
        %s247 = scalar_select %p246, %s243, 7
        %s248 = smul.addr %s245, 8
        %s249 = sadd.s32 %s247, %s248
        %s250 = smul.addr %s249, 8
        %s251 = scalar_lea.vmem %s0, %s250
        %s252 = smul.u32 4, %s24
        %v253 = vld [vmem:[%s251] sm:$0xff]
        %v254 = vld [vmem:[%s251 + $0x8] sm:$0xff]
        %v255 = vld [vmem:[%s251 + $0x10] sm:$0xff]
        %v256 = vld [vmem:[%s251 + $0x18] sm:$0xff]
        %v257 = vld [vmem:[%s1] sm:$0xff]
        %v258 = vld [vmem:[%s1 + $0x8] sm:$0xff]
        %v259 = vld [vmem:[%s1 + $0x10] sm:$0xff]
        %v260 = vld [vmem:[%s1 + $0x18] sm:$0xff]
        %vm261 = vcmask 261120
        %v263 = vsel %vm261, %v253, 0
        %v266 = vsel %vm261, %v254, 0
        %v269 = vsel %vm261, %v255, 0
        %v272 = vsel %vm261, %v256, 0
        %274 = vmatprep.subr.mxu0 0.0
        %275 = vmatpush1.msra.mxu0 0.0
        %276 = vmatprep.subr.mxu0 0.0
        %277 = vmatpush1.msra.mxu0 0.0
        %278 = vmatprep.subr.mxu0 0.0
        %279 = vmatpush1.msra.mxu0 0.0
        %280 = vmatprep.subr.mxu0 0.0
        %281 = vmatpush1.msra.mxu0 0.0
        %282 = vmatprep.subr.mxu0 0.0
        %283 = vmatpush1.msra.mxu0 0.0
        %284 = vmatprep.subr.mxu0 0.0
        %285 = vmatpush1.msra.mxu0 0.0
        %286 = vmatprep.subr.mxu0 0.0
        %287 = vmatpush1.msra.mxu0 0.0
        %288 = vmatprep.subr.mxu0 0.0
        %289 = vmatpush1.msra.mxu0 0.0
        %290 = vmatprep.subr.mxu0 0.0
        %291 = vmatpush1.msra.mxu0 0.0
        %292 = vmatprep.subr.mxu0 0.0
        %293 = vmatpush1.msra.mxu0 0.0
        %294 = vmatprep.subr.mxu0 0.0
        %295 = vmatpush1.msra.mxu0 0.0
        %296 = vmatprep.subr.mxu0 0.0
        %297 = vmatpush1.msra.mxu0 0.0
        %298 = vmatprep.subr.mxu0 0.0
        %299 = vmatpush1.msra.mxu0 %v260
        %300 = vmatprep.subr.mxu0 0.0
        %301 = vmatpush1.msra.mxu0 %v259
        %302 = vmatprep.subr.mxu0 0.0
        %303 = vmatpush1.msra.mxu0 %v258
        %304 = vmatprep.subr.mxu0 0.0
        %305 = vmatpush1.msra.mxu0 %v257
        %306 = vmatprep.subr.mxu0 0.0
        %307 = vmatpush2.msra.mxu0 0.0
        %308 = vmatprep.subr.mxu0 0.0
        %309 = vmatpush2.msra.mxu0 0.0
        %310 = vmatprep.subr.mxu0 0.0
        %311 = vmatpush2.msra.mxu0 0.0
        %312 = vmatprep.subr.mxu0 0.0
        %313 = vmatpush2.msra.mxu0 0.0
        %314 = vmatprep.subr.mxu0 0.0
        %315 = vmatpush2.msra.mxu0 0.0
        %316 = vmatprep.subr.mxu0 0.0
        %317 = vmatpush2.msra.mxu0 0.0
        %318 = vmatprep.subr.mxu0 0.0
        %319 = vmatpush2.msra.mxu0 0.0
        %320 = vmatprep.subr.mxu0 0.0
        %321 = vmatpush2.msra.mxu0 0.0
        %322 = vmatprep.subr.mxu0 0.0
        %323 = vmatpush2.msra.mxu0 0.0
        %324 = vmatprep.subr.mxu0 0.0
        %325 = vmatpush2.msra.mxu0 0.0
        %326 = vmatprep.subr.mxu0 0.0
        %327 = vmatpush2.msra.mxu0 0.0
        %328 = vmatprep.subr.mxu0 0.0
        %329 = vmatpush2.msra.mxu0 0.0
        %330 = vmatprep.subr.mxu0 0.0
        %331 = vmatpush2.msra.mxu0 0.0
        %332 = vmatprep.subr.mxu0 0.0
        %333 = vmatpush2.msra.mxu0 0.0
        %334 = vmatprep.subr.mxu0 0.0
        %335 = vmatpush2.msra.mxu0 0.0
        %336 = vmatprep.subr.mxu0 0.0
        %337 = vmatpush2.msra.mxu0 0.0
        %338 = vmatprep.mubr.f32.mxu0 0.0
        %339 = vmatmul.mubr.f32.gmra.mxu0 %v263
        %v340 = vpop.f32.mrf.mxu0
        %v341 = vadd.f32 0.0, %v340
        %v342 = vpop.f32.mrf.mxu0
        %343 = vmatprep.mubr.f32.mxu0 0.0
        %344 = vmatmul.mubr.f32.gmra.mxu0 %v266
        %v345 = vpop.f32.mrf.mxu0
        %v346 = vadd.f32 0.0, %v345
        %v347 = vpop.f32.mrf.mxu0
        %348 = vmatprep.mubr.f32.mxu0 0.0
        %349 = vmatmul.mubr.f32.gmra.mxu0 %v269
        %v350 = vpop.f32.mrf.mxu0
        %v351 = vadd.f32 0.0, %v350
        %v352 = vpop.f32.mrf.mxu0
        %353 = vmatprep.mubr.f32.mxu0 0.0
        %354 = vmatmul.mubr.f32.gmra.mxu0 %v272
        %v355 = vpop.f32.mrf.mxu0
        %v356 = vadd.f32 0.0, %v355
        %v357 = vpop.f32.mrf.mxu0
        %358 = vdwg.mxu0
        %v359 = vmul.f32 %v341, %v341
        %v360 = vmul.f32 %v346, %v346
        %v361 = vmul.f32 %v351, %v351
        %v362 = vmul.f32 %v356, %v356
        %v363 = vld [vmem:[%s2] sm:$0xff]
        %v364 = vld [vmem:[%s2 + $0x8] sm:$0xff]
        %v365 = vld [vmem:[%s2 + $0x10] sm:$0xff]
        %v366 = vld [vmem:[%s2 + $0x18] sm:$0xff]
        %v367 = vld [vmem:[%s2 + $0x20] sm:$0xff]
        %v368 = vld [vmem:[%s2 + $0x28] sm:$0xff]
        %v369 = vld [vmem:[%s2 + $0x30] sm:$0xff]
        %v370 = vld [vmem:[%s2 + $0x38] sm:$0xff]
        %vm371 = vcmask 523264
        %v373 = vsel %vm371, %v359, 0
        %v376 = vsel %vm371, %v360, 0
        %v379 = vsel %vm371, %v361, 0
        %v382 = vsel %vm371, %v362, 0
        %384 = vmatprep.subr.mxu0 0.0
        %385 = vmatpush1.msra.mxu0 0.0
        %386 = vmatprep.subr.mxu0 0.0
        %387 = vmatpush1.msra.mxu0 0.0
        %388 = vmatprep.subr.mxu0 0.0
        %389 = vmatpush1.msra.mxu0 0.0
        %390 = vmatprep.subr.mxu0 0.0
        %391 = vmatpush1.msra.mxu0 0.0
        %392 = vmatprep.subr.mxu0 0.0
        %393 = vmatpush1.msra.mxu0 0.0
        %394 = vmatprep.subr.mxu0 0.0
        %395 = vmatpush1.msra.mxu0 0.0
        %396 = vmatprep.subr.mxu0 0.0
        %397 = vmatpush1.msra.mxu0 0.0
        %398 = vmatprep.subr.mxu0 0.0
        %399 = vmatpush1.msra.mxu0 0.0
        %400 = vmatprep.subr.mxu0 0.0
        %401 = vmatpush1.msra.mxu0 %v370
        %402 = vmatprep.subr.mxu0 0.0
        %403 = vmatpush1.msra.mxu0 %v369
        %404 = vmatprep.subr.mxu0 0.0
        %405 = vmatpush1.msra.mxu0 %v368
        %406 = vmatprep.subr.mxu0 0.0
        %407 = vmatpush1.msra.mxu0 %v367
        %408 = vmatprep.subr.mxu0 0.0
        %409 = vmatpush1.msra.mxu0 %v366
        %410 = vmatprep.subr.mxu0 0.0
        %411 = vmatpush1.msra.mxu0 %v365
        %412 = vmatprep.subr.mxu0 0.0
        %413 = vmatpush1.msra.mxu0 %v364
        %414 = vmatprep.subr.mxu0 0.0
        %415 = vmatpush1.msra.mxu0 %v363
        %416 = vmatprep.subr.mxu0 0.0
        %417 = vmatpush2.msra.mxu0 0.0
        %418 = vmatprep.subr.mxu0 0.0
        %419 = vmatpush2.msra.mxu0 0.0
        %420 = vmatprep.subr.mxu0 0.0
        %421 = vmatpush2.msra.mxu0 0.0
        %422 = vmatprep.subr.mxu0 0.0
        %423 = vmatpush2.msra.mxu0 0.0
        %424 = vmatprep.subr.mxu0 0.0
        %425 = vmatpush2.msra.mxu0 0.0
        %426 = vmatprep.subr.mxu0 0.0
        %427 = vmatpush2.msra.mxu0 0.0
        %428 = vmatprep.subr.mxu0 0.0
        %429 = vmatpush2.msra.mxu0 0.0
        %430 = vmatprep.subr.mxu0 0.0
        %431 = vmatpush2.msra.mxu0 0.0
        %432 = vmatprep.subr.mxu0 0.0
        %433 = vmatpush2.msra.mxu0 0.0
        %434 = vmatprep.subr.mxu0 0.0
        %435 = vmatpush2.msra.mxu0 0.0
        %436 = vmatprep.subr.mxu0 0.0
        %437 = vmatpush2.msra.mxu0 0.0
        %438 = vmatprep.subr.mxu0 0.0
        %439 = vmatpush2.msra.mxu0 0.0
        %440 = vmatprep.subr.mxu0 0.0
        %441 = vmatpush2.msra.mxu0 0.0
        %442 = vmatprep.subr.mxu0 0.0
        %443 = vmatpush2.msra.mxu0 0.0
        %444 = vmatprep.subr.mxu0 0.0
        %445 = vmatpush2.msra.mxu0 0.0
        %446 = vmatprep.subr.mxu0 0.0
        %447 = vmatpush2.msra.mxu0 0.0
        %448 = vmatprep.mubr.f32.mxu0 0.0
        %449 = vmatmul.mubr.f32.gmra.mxu0 %v373
        %v450 = vpop.f32.mrf.mxu0
        %v451 = vadd.f32 1e-05, %v450
        %v452 = vpop.f32.mrf.mxu0
        %453 = vmatprep.mubr.f32.mxu0 0.0
        %454 = vmatmul.mubr.f32.gmra.mxu0 %v376
        %v455 = vpop.f32.mrf.mxu0
        %v456 = vadd.f32 1e-05, %v455
        %v457 = vpop.f32.mrf.mxu0
        %458 = vmatprep.mubr.f32.mxu0 0.0
        %459 = vmatmul.mubr.f32.gmra.mxu0 %v379
        %v460 = vpop.f32.mrf.mxu0
        %v461 = vadd.f32 1e-05, %v460
        %v462 = vpop.f32.mrf.mxu0
        %463 = vmatprep.mubr.f32.mxu0 0.0
        %464 = vmatmul.mubr.f32.gmra.mxu0 %v382
        %v465 = vpop.f32.mrf.mxu0
        %v466 = vadd.f32 1e-05, %v465
        %v467 = vpop.f32.mrf.mxu0
        %468 = vdwg.mxu0
        %v469 = vrsqrt.pop %v451
        %v470 = vrsqrt.pop %v456
        %v471 = vrsqrt.pop %v461
        %v472 = vrsqrt.pop %v466
        %v473 = vmul.f32 %v341, %v469
        %v474 = vmul.f32 %v346, %v470
        %v475 = vmul.f32 %v351, %v471
        %v476 = vmul.f32 %v356, %v472
        %v477 = vld [vmem:[%s3] sm:$0x1]
        %v479 = vlaneseq
        %v480 = vshrl.u32 %v479, 7
        %v481 = vsub.s32 0, %v480
        %v482 = vrot.slane %v477, %v481
        %v484 = vmul.f32 %v473, %v482
        %v485 = vmul.f32 %v474, %v482
        %v486 = vmul.f32 %v475, %v482
        %v487 = vmul.f32 %v476, %v482
        %v488 = vld [vmem:[%s4] sm:$0x1]
        %v490 = vlaneseq
        %v491 = vshrl.u32 %v490, 7
        %v492 = vsub.s32 0, %v491
        %v493 = vrot.slane %v488, %v492
        %v495 = vadd.f32 %v484, %v493
        %v496 = vadd.f32 %v485, %v493
        %v497 = vadd.f32 %v486, %v493
        %v498 = vadd.f32 %v487, %v493
        %503 = vrot.lane.b32.xlu0 %v495, 96
        %v504 = vpop.permute.xlu0 %503
        %505 = vrot.lane.b32.xlu0 %v496, 96
        %v506 = vpop.permute.xlu0 %505
        %507 = vrot.lane.b32.xlu0 %v497, 96
        %v508 = vpop.permute.xlu0 %507
        %509 = vrot.lane.b32.xlu0 %v498, 96
        %v510 = vpop.permute.xlu0 %509
        %v515 = vcombine.high %v495, 0.0
        %v517 = vunpack.c.l.s4 1983009808
        %v518 = vunpack.c.0.s8 %v517
        %v519 = vlaneseq
        %v520 = vshrl.u32 %v519, 7
        %v521 = vsub.s32 %v518, %v520
        %v522 = vrot.slane %v495, %v521
        %v524 = vunpack.c.l.s4 1983009808
        %v525 = vunpack.c.0.s8 %v524
        %v526 = vlaneseq
        %v527 = vshrl.u32 %v526, 7
        %v528 = vsub.s32 %v525, %v527
        %v529 = vrot.slane %v515, %v528
        %v530 = vcombine.high %v504, 0.0
        %v532 = vunpack.c.l.s4 1983009808
        %v533 = vunpack.c.0.s8 %v532
        %v534 = vlaneseq
        %v535 = vshrl.u32 %v534, 7
        %v536 = vsub.s32 %v533, %v535
        %v537 = vrot.slane %v504, %v536
        %v539 = vunpack.c.l.s4 1983009808
        %v540 = vunpack.c.0.s8 %v539
        %v541 = vlaneseq
        %v542 = vshrl.u32 %v541, 7
        %v543 = vsub.s32 %v540, %v542
        %v544 = vrot.slane %v530, %v543
        %v545 = vcombine.low %v522, %v537
        %v546 = vcombine.high %v522, %v537
        %v548 = vunpack.c.l.s4 1934713408
        %v549 = vunpack.c.0.s8 %v548
        %v550 = vlaneseq
        %v551 = vshrl.u32 %v550, 7
        %v552 = vsub.s32 %v549, %v551
        %v553 = vrot.slane %v545, %v552
        %v555 = vunpack.c.l.s4 1934713408
        %v556 = vunpack.c.0.s8 %v555
        %v557 = vlaneseq
        %v558 = vshrl.u32 %v557, 7
        %v559 = vsub.s32 %v556, %v558
        %v560 = vrot.slane %v546, %v559
        %v561 = vcombine.low %v529, %v544
        %v562 = vcombine.high %v529, %v544
        %v564 = vunpack.c.l.s4 1934713408
        %v565 = vunpack.c.0.s8 %v564
        %v566 = vlaneseq
        %v567 = vshrl.u32 %v566, 7
        %v568 = vsub.s32 %v565, %v567
        %v569 = vrot.slane %v561, %v568
        %v571 = vunpack.c.l.s4 1934713408
        %v572 = vunpack.c.0.s8 %v571
        %v573 = vlaneseq
        %v574 = vshrl.u32 %v573, 7
        %v575 = vsub.s32 %v572, %v574
        %v576 = vrot.slane %v562, %v575
        %v577 = vcombine.high %v553, 0.0
        %v578 = vcombine.high %v560, 0.0
        %v579 = vcombine.high %v569, 0.0
        %v580 = vcombine.high %v576, 0.0
        %v581 = vcombine.high %v496, 0.0
        %v583 = vunpack.c.l.s4 1983009808
        %v584 = vunpack.c.0.s8 %v583
        %v585 = vlaneseq
        %v586 = vshrl.u32 %v585, 7
        %v587 = vsub.s32 %v584, %v586
        %v588 = vrot.slane %v496, %v587
        %v590 = vunpack.c.l.s4 1983009808
        %v591 = vunpack.c.0.s8 %v590
        %v592 = vlaneseq
        %v593 = vshrl.u32 %v592, 7
        %v594 = vsub.s32 %v591, %v593
        %v595 = vrot.slane %v581, %v594
        %v596 = vcombine.high %v506, 0.0
        %v598 = vunpack.c.l.s4 1983009808
        %v599 = vunpack.c.0.s8 %v598
        %v600 = vlaneseq
        %v601 = vshrl.u32 %v600, 7
        %v602 = vsub.s32 %v599, %v601
        %v603 = vrot.slane %v506, %v602
        %v605 = vunpack.c.l.s4 1983009808
        %v606 = vunpack.c.0.s8 %v605
        %v607 = vlaneseq
        %v608 = vshrl.u32 %v607, 7
        %v609 = vsub.s32 %v606, %v608
        %v610 = vrot.slane %v596, %v609
        %v611 = vcombine.low %v588, %v603
        %v612 = vcombine.high %v588, %v603
        %v614 = vunpack.c.l.s4 1934713408
        %v615 = vunpack.c.0.s8 %v614
        %v616 = vlaneseq
        %v617 = vshrl.u32 %v616, 7
        %v618 = vsub.s32 %v615, %v617
        %v619 = vrot.slane %v611, %v618
        %v621 = vunpack.c.l.s4 1934713408
        %v622 = vunpack.c.0.s8 %v621
        %v623 = vlaneseq
        %v624 = vshrl.u32 %v623, 7
        %v625 = vsub.s32 %v622, %v624
        %v626 = vrot.slane %v612, %v625
        %v627 = vcombine.low %v595, %v610
        %v628 = vcombine.high %v595, %v610
        %v630 = vunpack.c.l.s4 1934713408
        %v631 = vunpack.c.0.s8 %v630
        %v632 = vlaneseq
        %v633 = vshrl.u32 %v632, 7
        %v634 = vsub.s32 %v631, %v633
        %v635 = vrot.slane %v627, %v634
        %v637 = vunpack.c.l.s4 1934713408
        %v638 = vunpack.c.0.s8 %v637
        %v639 = vlaneseq
        %v640 = vshrl.u32 %v639, 7
        %v641 = vsub.s32 %v638, %v640
        %v642 = vrot.slane %v628, %v641
        %v643 = vcombine.high %v619, 0.0
        %v644 = vcombine.high %v626, 0.0
        %v645 = vcombine.high %v635, 0.0
        %v646 = vcombine.high %v642, 0.0
        %v647 = vcombine.high %v497, 0.0
        %v649 = vunpack.c.l.s4 1983009808
        %v650 = vunpack.c.0.s8 %v649
        %v651 = vlaneseq
        %v652 = vshrl.u32 %v651, 7
        %v653 = vsub.s32 %v650, %v652
        %v654 = vrot.slane %v497, %v653
        %v656 = vunpack.c.l.s4 1983009808
        %v657 = vunpack.c.0.s8 %v656
        %v658 = vlaneseq
        %v659 = vshrl.u32 %v658, 7
        %v660 = vsub.s32 %v657, %v659
        %v661 = vrot.slane %v647, %v660
        %v662 = vcombine.high %v508, 0.0
        %v664 = vunpack.c.l.s4 1983009808
        %v665 = vunpack.c.0.s8 %v664
        %v666 = vlaneseq
        %v667 = vshrl.u32 %v666, 7
        %v668 = vsub.s32 %v665, %v667
        %v669 = vrot.slane %v508, %v668
        %v671 = vunpack.c.l.s4 1983009808
        %v672 = vunpack.c.0.s8 %v671
        %v673 = vlaneseq
        %v674 = vshrl.u32 %v673, 7
        %v675 = vsub.s32 %v672, %v674
        %v676 = vrot.slane %v662, %v675
        %v677 = vcombine.low %v654, %v669
        %v678 = vcombine.high %v654, %v669
        %v680 = vunpack.c.l.s4 1934713408
        %v681 = vunpack.c.0.s8 %v680
        %v682 = vlaneseq
        %v683 = vshrl.u32 %v682, 7
        %v684 = vsub.s32 %v681, %v683
        %v685 = vrot.slane %v677, %v684
        %v687 = vunpack.c.l.s4 1934713408
        %v688 = vunpack.c.0.s8 %v687
        %v689 = vlaneseq
        %v690 = vshrl.u32 %v689, 7
        %v691 = vsub.s32 %v688, %v690
        %v692 = vrot.slane %v678, %v691
        %v693 = vcombine.low %v661, %v676
        %v694 = vcombine.high %v661, %v676
        %v696 = vunpack.c.l.s4 1934713408
        %v697 = vunpack.c.0.s8 %v696
        %v698 = vlaneseq
        %v699 = vshrl.u32 %v698, 7
        %v700 = vsub.s32 %v697, %v699
        %v701 = vrot.slane %v693, %v700
        %v703 = vunpack.c.l.s4 1934713408
        %v704 = vunpack.c.0.s8 %v703
        %v705 = vlaneseq
        %v706 = vshrl.u32 %v705, 7
        %v707 = vsub.s32 %v704, %v706
        %v708 = vrot.slane %v694, %v707
        %v709 = vcombine.high %v685, 0.0
        %v710 = vcombine.high %v692, 0.0
        %v711 = vcombine.high %v701, 0.0
        %v712 = vcombine.high %v708, 0.0
        %v713 = vcombine.high %v498, 0.0
        %v715 = vunpack.c.l.s4 1983009808
        %v716 = vunpack.c.0.s8 %v715
        %v717 = vlaneseq
        %v718 = vshrl.u32 %v717, 7
        %v719 = vsub.s32 %v716, %v718
        %v720 = vrot.slane %v498, %v719
        %v722 = vunpack.c.l.s4 1983009808
        %v723 = vunpack.c.0.s8 %v722
        %v724 = vlaneseq
        %v725 = vshrl.u32 %v724, 7
        %v726 = vsub.s32 %v723, %v725
        %v727 = vrot.slane %v713, %v726
        %v728 = vcombine.high %v510, 0.0
        %v730 = vunpack.c.l.s4 1983009808
        %v731 = vunpack.c.0.s8 %v730
        %v732 = vlaneseq
        %v733 = vshrl.u32 %v732, 7
        %v734 = vsub.s32 %v731, %v733
        %v735 = vrot.slane %v510, %v734
        %v737 = vunpack.c.l.s4 1983009808
        %v738 = vunpack.c.0.s8 %v737
        %v739 = vlaneseq
        %v740 = vshrl.u32 %v739, 7
        %v741 = vsub.s32 %v738, %v740
        %v742 = vrot.slane %v728, %v741
        %v743 = vcombine.low %v720, %v735
        %v744 = vcombine.high %v720, %v735
        %v746 = vunpack.c.l.s4 1934713408
        %v747 = vunpack.c.0.s8 %v746
        %v748 = vlaneseq
        %v749 = vshrl.u32 %v748, 7
        %v750 = vsub.s32 %v747, %v749
        %v751 = vrot.slane %v743, %v750
        %v753 = vunpack.c.l.s4 1934713408
        %v754 = vunpack.c.0.s8 %v753
        %v755 = vlaneseq
        %v756 = vshrl.u32 %v755, 7
        %v757 = vsub.s32 %v754, %v756
        %v758 = vrot.slane %v744, %v757
        %v759 = vcombine.low %v727, %v742
        %v760 = vcombine.high %v727, %v742
        %v762 = vunpack.c.l.s4 1934713408
        %v763 = vunpack.c.0.s8 %v762
        %v764 = vlaneseq
        %v765 = vshrl.u32 %v764, 7
        %v766 = vsub.s32 %v763, %v765
        %v767 = vrot.slane %v759, %v766
        %v769 = vunpack.c.l.s4 1934713408
        %v770 = vunpack.c.0.s8 %v769
        %v771 = vlaneseq
        %v772 = vshrl.u32 %v771, 7
        %v773 = vsub.s32 %v770, %v772
        %v774 = vrot.slane %v760, %v773
        %v775 = vcombine.high %v751, 0.0
        %v776 = vcombine.high %v758, 0.0
        %v777 = vcombine.high %v767, 0.0
        %v778 = vcombine.high %v774, 0.0
        %v779 = vcombine.low %v553, %v560
        %v781 = vunpack.c.l.s4 1983009808
        %v782 = vunpack.c.0.s8 %v781
        %v783 = vlaneseq
        %v784 = vshrl.u32 %v783, 7
        %v785 = vsub.s32 %v782, %v784
        %v786 = vrot.slane %v779, %v785
        %v787 = vcombine.low %v577, %v578
        %v789 = vunpack.c.l.s4 1983009808
        %v790 = vunpack.c.0.s8 %v789
        %v791 = vlaneseq
        %v792 = vshrl.u32 %v791, 7
        %v793 = vsub.s32 %v790, %v792
        %v794 = vrot.slane %v787, %v793
        %v795 = vcombine.low %v569, %v576
        %v797 = vunpack.c.l.s4 1983009808
        %v798 = vunpack.c.0.s8 %v797
        %v799 = vlaneseq
        %v800 = vshrl.u32 %v799, 7
        %v801 = vsub.s32 %v798, %v800
        %v802 = vrot.slane %v795, %v801
        %v803 = vcombine.low %v579, %v580
        %v805 = vunpack.c.l.s4 1983009808
        %v806 = vunpack.c.0.s8 %v805
        %v807 = vlaneseq
        %v808 = vshrl.u32 %v807, 7
        %v809 = vsub.s32 %v806, %v808
        %v810 = vrot.slane %v803, %v809
        %v811 = vcombine.low %v786, %v794
        %v813 = vunpack.c.l.s4 1934713408
        %v814 = vunpack.c.0.s8 %v813
        %v815 = vlaneseq
        %v816 = vshrl.u32 %v815, 7
        %v817 = vsub.s32 %v814, %v816
        %v818 = vrot.slane %v811, %v817
        %v819 = vcombine.low %v802, %v810
        %v821 = vunpack.c.l.s4 1934713408
        %v822 = vunpack.c.0.s8 %v821
        %v823 = vlaneseq
        %v824 = vshrl.u32 %v823, 7
        %v825 = vsub.s32 %v822, %v824
        %v826 = vrot.slane %v819, %v825
        %v827 = vcombine.low %v818, %v826
        %v828 = vcombine.high %v818, %v826
        %v829 = vcombine.low %v619, %v626
        %v831 = vunpack.c.l.s4 1983009808
        %v832 = vunpack.c.0.s8 %v831
        %v833 = vlaneseq
        %v834 = vshrl.u32 %v833, 7
        %v835 = vsub.s32 %v832, %v834
        %v836 = vrot.slane %v829, %v835
        %v837 = vcombine.low %v643, %v644
        %v839 = vunpack.c.l.s4 1983009808
        %v840 = vunpack.c.0.s8 %v839
        %v841 = vlaneseq
        %v842 = vshrl.u32 %v841, 7
        %v843 = vsub.s32 %v840, %v842
        %v844 = vrot.slane %v837, %v843
        %v845 = vcombine.low %v635, %v642
        %v847 = vunpack.c.l.s4 1983009808
        %v848 = vunpack.c.0.s8 %v847
        %v849 = vlaneseq
        %v850 = vshrl.u32 %v849, 7
        %v851 = vsub.s32 %v848, %v850
        %v852 = vrot.slane %v845, %v851
        %v853 = vcombine.low %v645, %v646
        %v855 = vunpack.c.l.s4 1983009808
        %v856 = vunpack.c.0.s8 %v855
        %v857 = vlaneseq
        %v858 = vshrl.u32 %v857, 7
        %v859 = vsub.s32 %v856, %v858
        %v860 = vrot.slane %v853, %v859
        %v861 = vcombine.low %v836, %v844
        %v863 = vunpack.c.l.s4 1934713408
        %v864 = vunpack.c.0.s8 %v863
        %v865 = vlaneseq
        %v866 = vshrl.u32 %v865, 7
        %v867 = vsub.s32 %v864, %v866
        %v868 = vrot.slane %v861, %v867
        %v869 = vcombine.low %v852, %v860
        %v871 = vunpack.c.l.s4 1934713408
        %v872 = vunpack.c.0.s8 %v871
        %v873 = vlaneseq
        %v874 = vshrl.u32 %v873, 7
        %v875 = vsub.s32 %v872, %v874
        %v876 = vrot.slane %v869, %v875
        %v877 = vcombine.low %v868, %v876
        %v878 = vcombine.high %v868, %v876
        %v879 = vcombine.low %v685, %v692
        %v881 = vunpack.c.l.s4 1983009808
        %v882 = vunpack.c.0.s8 %v881
        %v883 = vlaneseq
        %v884 = vshrl.u32 %v883, 7
        %v885 = vsub.s32 %v882, %v884
        %v886 = vrot.slane %v879, %v885
        %v887 = vcombine.low %v709, %v710
        %v889 = vunpack.c.l.s4 1983009808
        %v890 = vunpack.c.0.s8 %v889
        %v891 = vlaneseq
        %v892 = vshrl.u32 %v891, 7
        %v893 = vsub.s32 %v890, %v892
        %v894 = vrot.slane %v887, %v893
        %v895 = vcombine.low %v701, %v708
        %v897 = vunpack.c.l.s4 1983009808
        %v898 = vunpack.c.0.s8 %v897
        %v899 = vlaneseq
        %v900 = vshrl.u32 %v899, 7
        %v901 = vsub.s32 %v898, %v900
        %v902 = vrot.slane %v895, %v901
        %v903 = vcombine.low %v711, %v712
        %v905 = vunpack.c.l.s4 1983009808
        %v906 = vunpack.c.0.s8 %v905
        %v907 = vlaneseq
        %v908 = vshrl.u32 %v907, 7
        %v909 = vsub.s32 %v906, %v908
        %v910 = vrot.slane %v903, %v909
        %v911 = vcombine.low %v886, %v894
        %v913 = vunpack.c.l.s4 1934713408
        %v914 = vunpack.c.0.s8 %v913
        %v915 = vlaneseq
        %v916 = vshrl.u32 %v915, 7
        %v917 = vsub.s32 %v914, %v916
        %v918 = vrot.slane %v911, %v917
        %v919 = vcombine.low %v902, %v910
        %v921 = vunpack.c.l.s4 1934713408
        %v922 = vunpack.c.0.s8 %v921
        %v923 = vlaneseq
        %v924 = vshrl.u32 %v923, 7
        %v925 = vsub.s32 %v922, %v924
        %v926 = vrot.slane %v919, %v925
        %v927 = vcombine.low %v918, %v926
        %v928 = vcombine.high %v918, %v926
        %v929 = vcombine.low %v751, %v758
        %v931 = vunpack.c.l.s4 1983009808
        %v932 = vunpack.c.0.s8 %v931
        %v933 = vlaneseq
        %v934 = vshrl.u32 %v933, 7
        %v935 = vsub.s32 %v932, %v934
        %v936 = vrot.slane %v929, %v935
        %v937 = vcombine.low %v775, %v776
        %v939 = vunpack.c.l.s4 1983009808
        %v940 = vunpack.c.0.s8 %v939
        %v941 = vlaneseq
        %v942 = vshrl.u32 %v941, 7
        %v943 = vsub.s32 %v940, %v942
        %v944 = vrot.slane %v937, %v943
        %v945 = vcombine.low %v767, %v774
        %v947 = vunpack.c.l.s4 1983009808
        %v948 = vunpack.c.0.s8 %v947
        %v949 = vlaneseq
        %v950 = vshrl.u32 %v949, 7
        %v951 = vsub.s32 %v948, %v950
        %v952 = vrot.slane %v945, %v951
        %v953 = vcombine.low %v777, %v778
        %v955 = vunpack.c.l.s4 1983009808
        %v956 = vunpack.c.0.s8 %v955
        %v957 = vlaneseq
        %v958 = vshrl.u32 %v957, 7
        %v959 = vsub.s32 %v956, %v958
        %v960 = vrot.slane %v953, %v959
        %v961 = vcombine.low %v936, %v944
        %v963 = vunpack.c.l.s4 1934713408
        %v964 = vunpack.c.0.s8 %v963
        %v965 = vlaneseq
        %v966 = vshrl.u32 %v965, 7
        %v967 = vsub.s32 %v964, %v966
        %v968 = vrot.slane %v961, %v967
        %v969 = vcombine.low %v952, %v960
        %v971 = vunpack.c.l.s4 1934713408
        %v972 = vunpack.c.0.s8 %v971
        %v973 = vlaneseq
        %v974 = vshrl.u32 %v973, 7
        %v975 = vsub.s32 %v972, %v974
        %v976 = vrot.slane %v969, %v975
        %v977 = vcombine.low %v968, %v976
        %v978 = vcombine.high %v968, %v976
        %v979 = vcombine.low %v827, %v877
        %v980 = vcombine.high %v827, %v877
        %v982 = vunpack.c.l.s4 1983009808
        %v983 = vunpack.c.0.s8 %v982
        %v984 = vlaneseq
        %v985 = vshrl.u32 %v984, 7
        %v986 = vsub.s32 %v983, %v985
        %v987 = vrot.slane %v979, %v986
        %v989 = vunpack.c.l.s4 1983009808
        %v990 = vunpack.c.0.s8 %v989
        %v991 = vlaneseq
        %v992 = vshrl.u32 %v991, 7
        %v993 = vsub.s32 %v990, %v992
        %v994 = vrot.slane %v980, %v993
        %v995 = vcombine.low %v828, %v878
        %v996 = vcombine.high %v828, %v878
        %v998 = vunpack.c.l.s4 1983009808
        %v999 = vunpack.c.0.s8 %v998
        %v1000 = vlaneseq
        %v1001 = vshrl.u32 %v1000, 7
        %v1002 = vsub.s32 %v999, %v1001
        %v1003 = vrot.slane %v995, %v1002
        %v1005 = vunpack.c.l.s4 1983009808
        %v1006 = vunpack.c.0.s8 %v1005
        %v1007 = vlaneseq
        %v1008 = vshrl.u32 %v1007, 7
        %v1009 = vsub.s32 %v1006, %v1008
        %v1010 = vrot.slane %v996, %v1009
        %v1011 = vcombine.low %v927, %v977
        %v1012 = vcombine.high %v927, %v977
        %v1014 = vunpack.c.l.s4 1983009808
        %v1015 = vunpack.c.0.s8 %v1014
        %v1016 = vlaneseq
        %v1017 = vshrl.u32 %v1016, 7
        %v1018 = vsub.s32 %v1015, %v1017
        %v1019 = vrot.slane %v1011, %v1018
        %v1021 = vunpack.c.l.s4 1983009808
        %v1022 = vunpack.c.0.s8 %v1021
        %v1023 = vlaneseq
        %v1024 = vshrl.u32 %v1023, 7
        %v1025 = vsub.s32 %v1022, %v1024
        %v1026 = vrot.slane %v1012, %v1025
        %v1027 = vcombine.low %v928, %v978
        %v1028 = vcombine.high %v928, %v978
        %v1030 = vunpack.c.l.s4 1983009808
        %v1031 = vunpack.c.0.s8 %v1030
        %v1032 = vlaneseq
        %v1033 = vshrl.u32 %v1032, 7
        %v1034 = vsub.s32 %v1031, %v1033
        %v1035 = vrot.slane %v1027, %v1034
        %v1037 = vunpack.c.l.s4 1983009808
        %v1038 = vunpack.c.0.s8 %v1037
        %v1039 = vlaneseq
        %v1040 = vshrl.u32 %v1039, 7
        %v1041 = vsub.s32 %v1038, %v1040
        %v1042 = vrot.slane %v1028, %v1041
        %v1043 = vcombine.low %v987, %v1003
        %v1044 = vcombine.high %v987, %v1003
        %v1046 = vunpack.c.l.s4 1934713408
        %v1047 = vunpack.c.0.s8 %v1046
        %v1048 = vlaneseq
        %v1049 = vshrl.u32 %v1048, 7
        %v1050 = vsub.s32 %v1047, %v1049
        %v1051 = vrot.slane %v1043, %v1050
        %v1053 = vunpack.c.l.s4 1934713408
        %v1054 = vunpack.c.0.s8 %v1053
        %v1055 = vlaneseq
        %v1056 = vshrl.u32 %v1055, 7
        %v1057 = vsub.s32 %v1054, %v1056
        %v1058 = vrot.slane %v1044, %v1057
        %v1059 = vcombine.low %v994, %v1010
        %v1060 = vcombine.high %v994, %v1010
        %v1062 = vunpack.c.l.s4 1934713408
        %v1063 = vunpack.c.0.s8 %v1062
        %v1064 = vlaneseq
        %v1065 = vshrl.u32 %v1064, 7
        %v1066 = vsub.s32 %v1063, %v1065
        %v1067 = vrot.slane %v1059, %v1066
        %v1069 = vunpack.c.l.s4 1934713408
        %v1070 = vunpack.c.0.s8 %v1069
        %v1071 = vlaneseq
        %v1072 = vshrl.u32 %v1071, 7
        %v1073 = vsub.s32 %v1070, %v1072
        %v1074 = vrot.slane %v1060, %v1073
        %v1075 = vcombine.low %v1019, %v1035
        %v1076 = vcombine.high %v1019, %v1035
        %v1078 = vunpack.c.l.s4 1934713408
        %v1079 = vunpack.c.0.s8 %v1078
        %v1080 = vlaneseq
        %v1081 = vshrl.u32 %v1080, 7
        %v1082 = vsub.s32 %v1079, %v1081
        %v1083 = vrot.slane %v1075, %v1082
        %v1085 = vunpack.c.l.s4 1934713408
        %v1086 = vunpack.c.0.s8 %v1085
        %v1087 = vlaneseq
        %v1088 = vshrl.u32 %v1087, 7
        %v1089 = vsub.s32 %v1086, %v1088
        %v1090 = vrot.slane %v1076, %v1089
        %v1091 = vcombine.low %v1026, %v1042
        %v1092 = vcombine.high %v1026, %v1042
        %v1094 = vunpack.c.l.s4 1934713408
        %v1095 = vunpack.c.0.s8 %v1094
        %v1096 = vlaneseq
        %v1097 = vshrl.u32 %v1096, 7
        %v1098 = vsub.s32 %v1095, %v1097
        %v1099 = vrot.slane %v1091, %v1098
        %v1101 = vunpack.c.l.s4 1934713408
        %v1102 = vunpack.c.0.s8 %v1101
        %v1103 = vlaneseq
        %v1104 = vshrl.u32 %v1103, 7
        %v1105 = vsub.s32 %v1102, %v1104
        %v1106 = vrot.slane %v1092, %v1105
        %v1107 = vcombine.low %v1051, %v1083
        %v1108 = vcombine.high %v1051, %v1083
        %v1109 = vcombine.low %v1058, %v1090
        %v1110 = vcombine.high %v1058, %v1090
        %v1111 = vcombine.low %v1067, %v1099
        %v1112 = vcombine.high %v1067, %v1099
        %v1113 = vcombine.low %v1074, %v1106
        %v1114 = vcombine.high %v1074, %v1106
        %1116 = vrot.lane.b32.xlu0 %v1108, 32
        %v1117 = vpop.permute.xlu0 %1116
        %1120 = vrot.lane.b32.xlu0 %v1109, 64
        %v1121 = vpop.permute.xlu0 %1120
        %1124 = vrot.lane.b32.xlu0 %v1110, 96
        %v1125 = vpop.permute.xlu0 %1124
        %1128 = vrot.lane.b32.xlu0 %v1112, 32
        %v1129 = vpop.permute.xlu0 %1128
        %1132 = vrot.lane.b32.xlu0 %v1113, 64
        %v1133 = vpop.permute.xlu0 %1132
        %1136 = vrot.lane.b32.xlu0 %v1114, 96
        %v1137 = vpop.permute.xlu0 %1136
        %v1139 = vsel %vm261, %v1107, %v1117
        %v1140 = vsel %vm371, %v1139, %v1121
        %vm1141 = vcmask 785408
        %v1142 = vsel %vm1141, %v1140, %v1125
        %v1143 = vsel %vm261, %v1111, %v1129
        %v1144 = vsel %vm371, %v1143, %v1133
        %v1145 = vsel %vm1141, %v1144, %v1137
        %1146 = vst [vmem:[%s242] sm:$0xff] %v1142
        %1147 = vst [vmem:[%s242 + $0x8] sm:$0xff] %v1145
        %s1148 = sand.u32 %s153, 1
        %s1149 = scalar_lea.sflag [#allocation3], %s1148
        %s1150 = sand.u32 %s153, 1
        %s1151 = smul.addr %s1150, 16
        %s1152 = scalar_lea.vmem [#allocation2], %s1151
        // Predicated region
        $region41: #{tpu_custom_call.1} parent=39 // pred_check
          %p1153 = pneg %p163
        $region42: #{tpu_custom_call.1} parent=39 // pred_check_branch
          %1155 = sbr.rel (%p1153) target = $region44
        $region43: #{tpu_custom_call.1} parent=39 // pred_region
          %s1157 = ssub.s32 256, 256
          %1158 = vsyncadd %s1149, %s1157
          %s1159 = smul.addr %s24, 2
          %s1160 = smul.addr %s23, 4
          %s1161 = sadd.s32 %s1159, %s1160
          %s1162 = smul.addr %s1161, 128
          %s1163 = scalar_lea.hbm %s5, %s1162
          %s1165 = sshll.u32 %s1152, 4
          %s1166 = int_to_ptr.vmem [resolvable:$true] %s1165
          %1168 = dma.vmem_to_hbm [thread:$0]  %s1166, 256, %s1163, %s1149
        $region44: #{tpu_custom_call.1} parent=39 // pred_fallthru
          _
      $region40: #{tpu_custom_call.1} parent=5 // pred_fallthru
        _
      %p1169 = scmp.le.s32.totalorder 2, %s14
      // Predicated region
      $region45: #{tpu_custom_call.1} parent=5 // pred_check
        %p1170 = pneg %p1169
      $region46: #{tpu_custom_call.1} parent=5 // pred_check_branch
        %1172 = sbr.rel (%p1170) target = $region48
      $region47: #{tpu_custom_call.1} parent=5 // pred_region
        %s1173 = ssub.s32 %s14, 2
        // Predicated region
        $region49: #{tpu_custom_call.1} parent=47 // pred_check
          %p1174 = pneg %p169
        $region50: #{tpu_custom_call.1} parent=47 // pred_check_branch
          %1176 = sbr.rel (%p1174) target = $region52
        $region51: #{tpu_custom_call.1} parent=47 // pred_region
          %s1177 = sand.u32 %s154, 1
          %s1178 = scalar_lea.sflag [#allocation3], %s1177
          %s1179 = sand.u32 %s154, 1
          %s1180 = smul.addr %s1179, 16
          %s1181 = scalar_lea.vmem [#allocation2], %s1180
          %1182 = dma.done %s1178, 256
        $region52: #{tpu_custom_call.1} parent=47 // pred_fallthru
          _
      $region48: #{tpu_custom_call.1} parent=5 // pred_fallthru
        _
    $region6: #{tpu_custom_call.1} parent=1 // loop_footer
      %s18 = sadd.s32 1, %s14
    $region7: #{tpu_custom_call.1} parent=1 // loop_footer_branch
      %13 = sbr.rel target = $region3
    $region8: #{tpu_custom_call.1} parent=1 // loop_exit
      _
    %1183 = vsyncpa [#allocation3], 1
    %s1184 = scalar_lea.sflag [#allocation3], 1
    %1185 = vsyncpa %s1184, 1

</llo_original>
